<compile_context>
chip_gen: v6e
topology: v6e:2x2x1
jax: 0.10.0
libtpu: 0.0.40
codegen_flags: <defaults>
</compile_context>

<pallas_src>
import jax
import jax.numpy as jnp
from jax import lax
from jax.experimental import pallas as pl
from jax.experimental.pallas import tpu as pltpu

# ---- static hyper-parameters (stand-ins for parse_args()) -------------------
N_USERS = 64
N_ITEMS = 128
EMBED_DIM = 64            # embedding_dim
FEAT_EMBED_DIM = 64       # args.feat_embed_dim
IMAGE_FEAT_DIM = 128      # image_feats.shape[1]
TEXT_FEAT_DIM = 128       # text_feats.shape[1] (== IMAGE_FEAT_DIM so modalities stack)
TOPK = 4                  # args.topk
N_LAYERS = 2              # args.n_layers     (item-graph propagation)
N_UI_LAYERS = 2           # len(weight_size)  (lightgcn propagation)
LAMBDA_COEFF = 0.5        # args.lambda_coeff
TDA_DIM = 232             # per-modality TDA vector length (12+10+10+100+100)
N_MODAL = 2               # image, text

UI_NODES = N_USERS + N_ITEMS     # 192
UI_PAD = 256                     # zero-padded so LightGCN operands are lane-dense
PROJ_PACK_ROWS = 8 + FEAT_EMBED_DIM   # row 0: tda_bias, rows 8:72: W_ig


# ------------------------- in-kernel building blocks -------------------------
def _l2_normalize(x, eps=1e-24):
    # x / ||x||_2 == x * rsqrt(max(||x||^2, eps)); rsqrt runs on the EUP slot.
    ssum = jnp.sum(x * x, axis=-1, keepdims=True)
    return x * lax.rsqrt(jnp.maximum(ssum, eps))


def _build_sim(x):
    # cosine similarity of a 2-D feature matrix: row-normalize, then X @ X^T
    # on the MXU with bf16 operands / f32 accumulation.
    xn = _l2_normalize(x).astype(jnp.bfloat16)
    return lax.dot_general(
        xn, xn, dimension_numbers=(((1,), (1,)), ((), ())),
        preferred_element_type=jnp.float32)


def _knn_threshold(a, topk):
    # Threshold form of torch.topk + scatter_: keep per-row values >= the k-th
    # largest, zero the rest (ties at the k-th value are all kept).  Works for
    # any leading batch dims; reductions are along the last (lane) axis.
    cur = a
    thresh = None
    for t in range(topk):                       # small static k, unrolled
        thresh = jnp.max(cur, axis=-1, keepdims=True)
        if t + 1 < topk:                        # dead final mask update skipped
            cur = jnp.where(cur >= thresh, -jnp.inf, cur)
    return jnp.where(a >= thresh, a, 0.0)


def _norm_laplacian(a):
    # L = D^{-1/2} A D^{-1/2} (D = diag(rowsum), zero-degree rows -> 0), done as
    # elementwise row/column scaling d_i * a_ij * d_j.  The (1, N) lane-major
    # copy of the row sums comes from a ones-vector matmul (no transpose).
    n = a.shape[0]
    rowsum_c = jnp.sum(a, axis=-1, keepdims=True)                      # (N, 1)
    rowsum_r = lax.dot_general(                                        # (1, N)
        jnp.ones((1, n), jnp.float32), a,
        dimension_numbers=(((1,), (1,)), ((), ())),
        preferred_element_type=jnp.float32)
    d_c = jnp.where(rowsum_c > 0.0, lax.rsqrt(rowsum_c), 0.0)
    d_r = jnp.where(rowsum_r > 0.0, lax.rsqrt(rowsum_r), 0.0)
    return a * d_c * d_r


# ------------------------------- Pallas kernels -------------------------------
def _forward_kernel(modal_w_ref,      # (1, 2)          raw modal_weight
                    mm_emb_ref,       # (2, 128, 128)   pretrained modality feats
                    mm_w_ref,         # (2, 128, 64)    image_trs / text_trs weights
                    mm_b_ref,         # (2, 1, 64)      image_trs / text_trs biases
                    mm_orig_ref,      # (2, 128, 128)   original modal adjacencies
                    item_emb_ref,     # (128, 64)
                    user_emb_ref,     # (64, 64)
                    ui_adj_ref,       # (256, 256)      zero-padded normalized UI graph
                    proj_ref,         # (72, 64)        row0 = tda_bias, rows8:72 = W_ig
                    out_ref):         # (192, 64)       rows0:64 u_g, rows64:192 i_g
    f32 = jnp.float32
    bf16 = jnp.bfloat16

    # ---- softmax(modal_weight) in-kernel (one tiny vreg) ----
    mw = modal_w_ref[...]                                    # (1, 2)
    mw = mw - jnp.max(mw, axis=-1, keepdims=True)
    e = jnp.exp(mw)
    w = e / jnp.sum(e, axis=-1, keepdims=True)
    w0 = w[:, 0:1]                                           # (1, 1)
    w1 = w[:, 1:2]                                           # (1, 1)

    # ---- both modality Linears as ONE batched bf16 matmul (f32 acc) ----
    feats = jnp.einsum(
        'mif,mfo->mio',
        mm_emb_ref[...].astype(bf16), mm_w_ref[...].astype(bf16),
        preferred_element_type=f32) + mm_b_ref[...]          # (2, 128, 64)

    # ---- batched cosine sim -> batched row-wise top-k threshold ----
    xn = _l2_normalize(feats).astype(bf16)
    sim = jnp.einsum('mio,mjo->mij', xn, xn,
                     preferred_element_type=f32)             # (2, 128, 128)
    adj = _knn_threshold(sim, TOPK)                          # (2, 128, 128)

    # ---- adjacency mixing (sequenced as in-place accumulation) ----
    learned = _norm_laplacian(w0 * adj[0] + w1 * adj[1])
    item_adj = (1.0 - LAMBDA_COEFF) * learned
    item_adj = item_adj + (LAMBDA_COEFF * w0) * mm_orig_ref[0]
    item_adj = item_adj + (LAMBDA_COEFF * w1) * mm_orig_ref[1]
    item_adj = item_adj.astype(bf16)

    # ---- item-graph propagation: h = A^{n_layers} @ item_id_embedding ----
    item_emb = item_emb_ref[...]
    h = item_emb
    for _ in range(N_LAYERS):
        h = jnp.dot(item_adj, h.astype(bf16), preferred_element_type=f32)

    # ---- LightGCN on the padded user-item graph (ego concat in registers) ----
    ego = jnp.concatenate(
        [user_emb_ref[...], item_emb,
         jnp.zeros((UI_PAD - UI_NODES, EMBED_DIM), f32)], axis=0)   # (256, 64)
    adj_bf = ui_adj_ref[...].astype(bf16)
    acc = ego                                        # mean of [ego, A ego, A^2 ego, ...]
    for _ in range(N_UI_LAYERS):
        ego = jnp.dot(adj_bf, ego.astype(bf16), preferred_element_type=f32)
        acc = acc + ego
    acc = acc * (1.0 / float(N_UI_LAYERS + 1))

    out_ref[0:N_USERS, :] = acc[0:N_USERS, :]        # u_g

    # ---- separated_projection(cat(i_g, tda)) + F.normalize(h) ----
    # cat-then-Linear == i_g @ W[:F] + (tda @ W[F:] + b); TDA term is row-constant
    # and arrives precomputed as row 0 of the proj pack.
    i_g = acc[N_USERS:UI_NODES, :]
    tda_bias = proj_ref[0:1, :]
    w_ig = proj_ref[8:8 + FEAT_EMBED_DIM, :]
    proj = jnp.dot(i_g.astype(bf16), w_ig.astype(bf16),
                   preferred_element_type=f32) + tda_bias
    out_ref[N_USERS:, :] = proj + _l2_normalize(h)   # i_g (== ... + F.normalize(h))


def _build_original_adj_kernel(feat_ref, adj_ref):
    # __init__-time original modal adjacency: sim -> knn -> laplacian, fused.
    adj_ref[...] = _norm_laplacian(
        _knn_threshold(_build_sim(feat_ref[...]), TOPK))


def _laplacian_kernel(a_ref, o_ref):
    o_ref[...] = _norm_laplacian(a_ref[...])


# ------------------------------- wrappers -------------------------------------
def _blk(shape):
    # per-item block of a batched array: leading batch dim squeezed, rest full.
    n = len(shape)
    return pl.BlockSpec((None,) + tuple(shape), lambda g, n=n: (g,) + (0,) * n)


def build_original_adj(feats):
    b, n, f = feats.shape
    return pl.pallas_call(
        _build_original_adj_kernel,
        out_shape=jax.ShapeDtypeStruct((b, n, n), jnp.float32),
        grid=(b,),
        in_specs=[_blk((n, f))],
        out_specs=_blk((n, n)),
        compiler_params=pltpu.CompilerParams(dimension_semantics=("parallel",)),
    )(feats)


def normalized_laplacian(a):
    b, n, _ = a.shape
    return pl.pallas_call(
        _laplacian_kernel,
        out_shape=jax.ShapeDtypeStruct((b, n, n), jnp.float32),
        grid=(b,),
        in_specs=[_blk((n, n))],
        out_specs=_blk((n, n)),
        compiler_params=pltpu.CompilerParams(dimension_semantics=("parallel",)),
    )(a)


def _fused_forward(modal_w, mm_emb, mm_w, mm_b, mm_orig,
                   item_emb, user_emb, ui_adj, proj_pack):
    g = mm_emb.shape[0]
    return pl.pallas_call(
        _forward_kernel,
        out_shape=jax.ShapeDtypeStruct((g, UI_NODES, EMBED_DIM), jnp.float32),
        grid=(g,),
        in_specs=[
            _blk((1, N_MODAL)),                                 # modal_weight
            _blk((N_MODAL, N_ITEMS, IMAGE_FEAT_DIM)),           # mm_emb
            _blk((N_MODAL, IMAGE_FEAT_DIM, FEAT_EMBED_DIM)),    # mm_w
            _blk((N_MODAL, 1, FEAT_EMBED_DIM)),                 # mm_b
            _blk((N_MODAL, N_ITEMS, N_ITEMS)),                  # mm_original_adj
            _blk((N_ITEMS, EMBED_DIM)),                         # item_id_embedding
            _blk((N_USERS, EMBED_DIM)),                         # user_embedding
            _blk((UI_PAD, UI_PAD)),                             # padded UI adjacency
            _blk((PROJ_PACK_ROWS, FEAT_EMBED_DIM)),             # tda_bias + W_ig pack
        ],
        out_specs=_blk((UI_NODES, EMBED_DIM)),
        compiler_params=pltpu.CompilerParams(
            dimension_semantics=("parallel",)),                 # megacore on v7x
    )(modal_w, mm_emb, mm_w, mm_b, mm_orig, item_emb, user_emb, ui_adj, proj_pack)


# ------------------------------ parameter init --------------------------------
def _xavier_uniform(key, shape, fan_in, fan_out):
    bound = (6.0 / (fan_in + fan_out)) ** 0.5
    return jax.random.uniform(key, shape, jnp.float32, -bound, bound)


def init_params(key, n_graphs=2):
    G = n_graphs
    ks = jax.random.split(key, 6)
    p = {}
    p["user_embedding"] = _xavier_uniform(ks[0], (G, N_USERS, EMBED_DIM),
                                          N_USERS, EMBED_DIM)
    p["item_id_embedding"] = _xavier_uniform(ks[1], (G, N_ITEMS, EMBED_DIM),
                                             N_ITEMS, EMBED_DIM)
    # pretrained modal features (Embedding.from_pretrained weights), stacked
    # per modality so both arrive in one DMA: axis1 = [image, text].
    p["mm_embedding"] = jax.random.normal(
        ks[2], (G, N_MODAL, N_ITEMS, IMAGE_FEAT_DIM), jnp.float32)
    # nn.Linear weights stored as (in, out), stacked per modality
    p["mm_trs_w"] = _xavier_uniform(
        ks[3], (G, N_MODAL, IMAGE_FEAT_DIM, FEAT_EMBED_DIM),
        IMAGE_FEAT_DIM, FEAT_EMBED_DIM)
    p["mm_trs_b"] = jnp.zeros((G, N_MODAL, 1, FEAT_EMBED_DIM), jnp.float32)
    p["modal_weight"] = jnp.full((G, 1, N_MODAL), 0.5, jnp.float32)

    # __init__-time original modal adjacency graphs (fused sim->knn->laplacian),
    # batched over all (graph, modality) pairs with a single gridded launch.
    flat = p["mm_embedding"].reshape(G * N_MODAL, N_ITEMS, IMAGE_FEAT_DIM)
    p["mm_original_adj"] = build_original_adj(flat).reshape(
        G, N_MODAL, N_ITEMS, N_ITEMS)

    # separated_projection split once at init: W[:F] (per-row) and W[F:] (TDA)
    sep_w = _xavier_uniform(ks[4], (G, FEAT_EMBED_DIM + 2 * TDA_DIM, FEAT_EMBED_DIM),
                            FEAT_EMBED_DIM + 2 * TDA_DIM, FEAT_EMBED_DIM)
    sep_b = jnp.zeros((G, 1, FEAT_EMBED_DIM), jnp.float32)

    # TODO(synk): compute_graph_tda relies on FlagserPersistence / gudhi
    # (persistence diagrams, entropy, Betti curves, landscapes, silhouettes),
    # host-only CPU libraries with no Pallas/JAX equivalent; we substitute a
    # deterministic unit-L2-norm 232-dim vector with the same shape/dtype
    # contract, and hoist its (row-constant) projection to init.
    raw = jnp.abs(jax.random.normal(ks[5], (G, TDA_DIM), jnp.float32)) + 0.1
    tda = raw / jnp.sqrt(jnp.sum(raw * raw, axis=-1, keepdims=True))
    tda_sep = jnp.concatenate([tda, tda], axis=-1)[:, None, :]        # (G, 1, 464)
    # cat(i_g, tda) @ W + b == i_g @ W[:F] + (tda @ W[F:] + b)
    tda_bias = jnp.einsum('gof,gfe->goe', tda_sep,
                          sep_w[:, FEAT_EMBED_DIM:, :]) + sep_b       # (G, 1, 64)
    w_ig = sep_w[:, :FEAT_EMBED_DIM, :]                               # (G, 64, 64)
    pad = jnp.zeros((G, 7, FEAT_EMBED_DIM), jnp.float32)
    # one small per-graph pack: row 0 = tda_bias, rows 8:72 = W_ig (8-aligned)
    p["proj_pack"] = jnp.concatenate([tda_bias, pad, w_ig], axis=1)   # (G, 72, 64)
    return p


# --------------------------------- forward ------------------------------------
@jax.jit
def forward(params, adj):
    # build_item_graph=True branch, cf_model='lightgcn'.
    # `adj` is the (G, 256, 256) zero-padded normalized user-item graph.
    out = _fused_forward(
        params["modal_weight"], params["mm_embedding"],
        params["mm_trs_w"], params["mm_trs_b"], params["mm_original_adj"],
        params["item_id_embedding"], params["user_embedding"],
        adj, params["proj_pack"])
    u_g = out[:, :N_USERS, :]
    i_g = out[:, N_USERS:, :]
    return u_g, i_g


# ----------------------------------- main --------------------------------------
if __name__ == "__main__":
    key = jax.random.PRNGKey(0)
    k_params, k_adj = jax.random.split(key)
    G = 2                                     # number of graphs batched over the grid
    params = init_params(k_params, n_graphs=G)

    # dense stand-in for the sparse normalized user-item interaction graph,
    # zero-padded to 256x256 so the LightGCN operands are lane-dense MXU tiles
    r = (jax.random.uniform(k_adj, (G, N_USERS, N_ITEMS)) < 0.1).astype(jnp.float32)
    bip = jnp.zeros((G, UI_PAD, UI_PAD), jnp.float32)
    bip = bip.at[:, :N_USERS, N_USERS:UI_NODES].set(r)
    bip = bip.at[:, N_USERS:UI_NODES, :N_USERS].set(jnp.swapaxes(r, 1, 2))
    adj = normalized_laplacian(bip)

    u_g, i_g = forward(params, adj)
    jax.block_until_ready((u_g, i_g))
    assert u_g.shape == (G, N_USERS, EMBED_DIM)
    assert i_g.shape == (G, N_ITEMS, FEAT_EMBED_DIM)
    assert bool(jnp.all(jnp.isfinite(u_g))) and bool(jnp.all(jnp.isfinite(i_g)))
    print("KERNEL_OK")
</pallas_src>

<mosaic_0001>
module attributes {stable_mosaic.version = 11 : i64} {
  func.func @_build_original_adj_kernel(%arg0: i32, %arg1: memref<1x128x128xf32, #tpu.memory_space<vmem>>, %arg2: memref<1x128x128xf32, #tpu.memory_space<vmem>>) attributes {dimension_semantics = [#tpu.dimension_semantics<parallel>], iteration_bounds = array<i64: 4>, scalar_prefetch = 0 : i64, scratch_operands = 0 : i64, tpu.core_type = #tpu.core_type<tc>, window_params = [{transform_indices = @transform_0, window_bounds = array<i64: 1, 128, 128>}, {transform_indices = @transform_1, window_bounds = array<i64: 1, 128, 128>}]} {
    %c0 = arith.constant 0 : index
    %c0_0 = arith.constant 0 : index
    %c0_1 = arith.constant 0 : index
    %0 = vector.load %arg1[%c0, %c0_0, %c0_1] : memref<1x128x128xf32, #tpu.memory_space<vmem>>, vector<1x128x128xf32>
    %1 = vector.shape_cast %0 : vector<1x128x128xf32> to vector<128x128xf32>
    %2 = arith.mulf %1, %1 : vector<128x128xf32>
    %cst = arith.constant dense<0.000000e+00> : vector<128xf32>
    %3 = vector.multi_reduction <add>, %2, %cst [1] : vector<128x128xf32> to vector<128xf32>
    %4 = vector.shape_cast %3 : vector<128xf32> to vector<128x1xf32>
    %cst_2 = arith.constant 1.000000e-24 : f32
    %5 = vector.broadcast %cst_2 : f32 to vector<128x1xf32>
    %6 = arith.maximumf %4, %5 : vector<128x1xf32>
    %7 = math.rsqrt %6 : vector<128x1xf32>
    %8 = vector.broadcast %7 : vector<128x1xf32> to vector<128x128xf32>
    %9 = arith.mulf %1, %8 : vector<128x128xf32>
    %10 = arith.truncf %9 : vector<128x128xf32> to vector<128x128xbf16>
    %cst_3 = arith.constant dense<0.000000e+00> : vector<128x128xf32>
    %11 = tpu.matmul %10, %10, %cst_3 {dimension_numbers = #tpu.dot_dimension_numbers<[1], [1], [0], [0], [0, 0, 1, 0], [], []>} : vector<128x128xbf16>, vector<128x128xbf16>, vector<128x128xf32> -> vector<128x128xf32>
    %cst_4 = arith.constant dense<0xFF800000> : vector<128xf32>
    %12 = vector.multi_reduction <maximumf>, %11, %cst_4 [1] : vector<128x128xf32> to vector<128xf32>
    %13 = vector.shape_cast %12 : vector<128xf32> to vector<128x1xf32>
    %14 = vector.broadcast %13 : vector<128x1xf32> to vector<128x128xf32>
    %15 = arith.cmpf oge, %11, %14 : vector<128x128xf32>
    %cst_5 = arith.constant 0xFF800000 : f32
    %16 = vector.broadcast %cst_5 : f32 to vector<128x128xf32>
    %17 = arith.select %15, %16, %11 : vector<128x128xi1>, vector<128x128xf32>
    %cst_6 = arith.constant dense<0xFF800000> : vector<128xf32>
    %18 = vector.multi_reduction <maximumf>, %17, %cst_6 [1] : vector<128x128xf32> to vector<128xf32>
    %19 = vector.shape_cast %18 : vector<128xf32> to vector<128x1xf32>
    %20 = vector.broadcast %19 : vector<128x1xf32> to vector<128x128xf32>
    %21 = arith.cmpf oge, %17, %20 : vector<128x128xf32>
    %cst_7 = arith.constant 0xFF800000 : f32
    %22 = vector.broadcast %cst_7 : f32 to vector<128x128xf32>
    %23 = arith.select %21, %22, %17 : vector<128x128xi1>, vector<128x128xf32>
    %cst_8 = arith.constant dense<0xFF800000> : vector<128xf32>
    %24 = vector.multi_reduction <maximumf>, %23, %cst_8 [1] : vector<128x128xf32> to vector<128xf32>
    %25 = vector.shape_cast %24 : vector<128xf32> to vector<128x1xf32>
    %26 = vector.broadcast %25 : vector<128x1xf32> to vector<128x128xf32>
    %27 = arith.cmpf oge, %23, %26 : vector<128x128xf32>
    %cst_9 = arith.constant 0xFF800000 : f32
    %28 = vector.broadcast %cst_9 : f32 to vector<128x128xf32>
    %29 = arith.select %27, %28, %23 : vector<128x128xi1>, vector<128x128xf32>
    %cst_10 = arith.constant dense<0xFF800000> : vector<128xf32>
    %30 = vector.multi_reduction <maximumf>, %29, %cst_10 [1] : vector<128x128xf32> to vector<128xf32>
    %31 = vector.shape_cast %30 : vector<128xf32> to vector<128x1xf32>
    %32 = vector.broadcast %31 : vector<128x1xf32> to vector<128x128xf32>
    %33 = arith.cmpf oge, %11, %32 : vector<128x128xf32>
    %cst_11 = arith.constant 0.000000e+00 : f32
    %34 = vector.broadcast %cst_11 : f32 to vector<128x128xf32>
    %35 = arith.select %33, %11, %34 : vector<128x128xi1>, vector<128x128xf32>
    %cst_12 = arith.constant dense<0.000000e+00> : vector<128xf32>
    %36 = vector.multi_reduction <add>, %35, %cst_12 [1] : vector<128x128xf32> to vector<128xf32>
    %37 = vector.shape_cast %36 : vector<128xf32> to vector<128x1xf32>
    %cst_13 = arith.constant 1.000000e+00 : f32
    %38 = vector.broadcast %cst_13 : f32 to vector<1x128xf32>
    %cst_14 = arith.constant dense<0.000000e+00> : vector<1x128xf32>
    %39 = tpu.matmul %38, %35, %cst_14 {dimension_numbers = #tpu.dot_dimension_numbers<[1], [1], [0], [0], [0, 0, 1, 0], [], []>} : vector<1x128xf32>, vector<128x128xf32>, vector<1x128xf32> -> vector<1x128xf32>
    %cst_15 = arith.constant 0.000000e+00 : f32
    %40 = vector.broadcast %cst_15 : f32 to vector<128x1xf32>
    %41 = arith.cmpf ogt, %37, %40 : vector<128x1xf32>
    %42 = math.rsqrt %37 : vector<128x1xf32>
    %cst_16 = arith.constant 0.000000e+00 : f32
    %43 = vector.broadcast %cst_16 : f32 to vector<128x1xf32>
    %44 = arith.select %41, %42, %43 : vector<128x1xi1>, vector<128x1xf32>
    %cst_17 = arith.constant 0.000000e+00 : f32
    %45 = vector.broadcast %cst_17 : f32 to vector<1x128xf32>
    %46 = arith.cmpf ogt, %39, %45 : vector<1x128xf32>
    %47 = math.rsqrt %39 : vector<1x128xf32>
    %cst_18 = arith.constant 0.000000e+00 : f32
    %48 = vector.broadcast %cst_18 : f32 to vector<1x128xf32>
    %49 = arith.select %46, %47, %48 : vector<1x128xi1>, vector<1x128xf32>
    %50 = vector.broadcast %44 : vector<128x1xf32> to vector<128x128xf32>
    %51 = arith.mulf %35, %50 : vector<128x128xf32>
    %52 = vector.broadcast %49 : vector<1x128xf32> to vector<128x128xf32>
    %53 = arith.mulf %51, %52 : vector<128x128xf32>
    %c0_19 = arith.constant 0 : index
    %c0_20 = arith.constant 0 : index
    %c0_21 = arith.constant 0 : index
    %54 = vector.load %arg2[%c0_19, %c0_20, %c0_21] : memref<1x128x128xf32, #tpu.memory_space<vmem>>, vector<1x128x128xf32>
    %55 = vector.shape_cast %54 : vector<1x128x128xf32> to vector<128x128xf32>
    %56 = vector.shape_cast %53 : vector<128x128xf32> to vector<1x128x128xf32>
    tpu.vector_store %arg2[%c0_19, %c0_20, %c0_21], %56 {strides = array<i32>} : memref<1x128x128xf32, #tpu.memory_space<vmem>>, vector<1x128x128xf32>,
    return
  }
  func.func @transform_0(%arg0: i32) -> (i32, i32, i32) {
    %c0_i32 = arith.constant 0 : i32
    %c0_i32_0 = arith.constant 0 : i32
    %c0_i32_1 = arith.constant 0 : i32
    return %arg0, %c0_i32, %c0_i32_0 : i32, i32, i32
  }
  func.func @transform_1(%arg0: i32) -> (i32, i32, i32) {
    %c0_i32 = arith.constant 0 : i32
    %c0_i32_0 = arith.constant 0 : i32
    %c0_i32_1 = arith.constant 0 : i32
    return %arg0, %c0_i32, %c0_i32_0 : i32, i32, i32
  }
}

</mosaic_0001>

<llo_original>
// kernel: tpu_custom_call.1
$region0: #{tpu_custom_call.1}
  #allocation0 [shape = 'u32[]', space=smem, size = 0x4, offset = 0x4, fixed_abs, tag = 'smem constant byte address 0x4 - core index']
  #allocation1 [shape = 'u32[144,128]{1,0:T(1,128)}', space=vmem, size = 0x12000, scoped, tag = 'internal scratch']
  %s0 = inlined_call_operand.hbm [shape: f32[4,128,128], index: 0, kind: input, shape index: {}]
  %s1 = inlined_call_operand.hbm [shape: f32[4,128,128], index: 1, kind: output, shape index: {}]
  %s2 = sld [smem:[#allocation0]]
  $region41: #{tpu_custom_call.1} parent=0
    _
  %s4 = ssub.s32 1, %s2
  %s5 = scalar_select 0, %s4, %s2
  $region1: #{tpu_custom_call.1} parent=0
    #allocation2 [shape = 'u8[131072]{0}', space=vmem, size = 0x20000, scoped, tag = 'input window, operand 0']
    #allocation3 [shape = 's32[2]{0}', space=sflag, size = 0x8, scoped, tag = 'scoped memory for tpu_custom_call.1']
    #allocation4 [shape = 's32[2]{0}', space=sflag, size = 0x8, scoped, tag = 'scoped memory for tpu_custom_call.1']
    #allocation5 [shape = 'u8[131072]{0}', space=vmem, size = 0x20000, scoped, tag = 'output window, operand 0']
    %6 = vsyncpa [#allocation3], 0
    %s7 = scalar_lea.sflag [#allocation3], 1
    %8 = vsyncpa %s7, 0
    %9 = vsyncpa [#allocation4], 0
    %s10 = scalar_lea.sflag [#allocation4], 1
    %11 = vsyncpa %s10, 0
    loop: start=0, step=1, limit=6
    $region2: #{tpu_custom_call.1} parent=1 // loop_pre_header
      _
    $region3: #{tpu_custom_call.1} parent=1 // loop_header
      %s13 = sphi 0, %s17
      %p14 = scmp.ge.s32.totalorder %s13, 6
      %s23 = sphi 0, %s25
      %s26 = sphi 0, %s23
      %s27 = sphi 0, %s26
      %s43 = sphi 0, %s27
      %s49 = sphi 0, %s51
      %s52 = sphi 0, %s49
      %s53 = sphi 0, %s52
      %s69 = sphi 0, %s53
    $region4: #{tpu_custom_call.1} parent=1 // loop_header_branch
      %16 = sbr.rel (%p14) target = $region8
    $region5: #{tpu_custom_call.1} parent=1 // loop_body
      %s18 = ssub.s32 %s13, 1
      %s19 = ssub.s32 %s13, 2
      %s20 = sadd.s32 %s13, 1
      %s21 = ssub.s32 %s13, %s20
      %p22 = scmp.eq.s32.totalorder %s21, 0
      %s24 = sadd.s32 %s23, 1
      %s25 = scalar_select %p22, %s23, %s24
      %p28 = pneg %p22
      %p29 = scmp.eq.s32.totalorder %s13, 3
      %p30 = por %p28, %p29
      %p31 = scmp.ne.s32.totalorder %s23, %s26
      %p32 = scmp.eq.s32.totalorder %s13, 0
      %p33 = por %p31, %p32
      %p34 = scmp.ne.s32.totalorder %s23, %s26
      %p35 = scmp.eq.s32.totalorder %s18, 3
      %p36 = por %p34, %p35
      %p37 = scmp.ne.s32.totalorder %s26, %s27
      %p38 = scmp.eq.s32.totalorder %s18, 0
      %p39 = por %p37, %p38
      %p40 = scmp.ne.s32.totalorder %s26, %s27
      %p41 = scmp.eq.s32.totalorder %s19, 3
      %p42 = por %p40, %p41
      %p44 = scmp.ne.s32.totalorder %s27, %s43
      %p45 = scmp.eq.s32.totalorder %s19, 0
      %p46 = por %p44, %p45
      %s47 = ssub.s32 %s13, %s20
      %p48 = scmp.eq.s32.totalorder %s47, 0
      %s50 = sadd.s32 %s49, 1
      %s51 = scalar_select %p48, %s49, %s50
      %p54 = pneg %p48
      %p55 = scmp.eq.s32.totalorder %s13, 3
      %p56 = por %p54, %p55
      %p57 = scmp.ne.s32.totalorder %s49, %s52
      %p58 = scmp.eq.s32.totalorder %s13, 0
      %p59 = por %p57, %p58
      %p60 = scmp.ne.s32.totalorder %s49, %s52
      %p61 = scmp.eq.s32.totalorder %s18, 3
      %p62 = por %p60, %p61
      %p63 = scmp.ne.s32.totalorder %s52, %s53
      %p64 = scmp.eq.s32.totalorder %s18, 0
      %p65 = por %p63, %p64
      %p66 = scmp.ne.s32.totalorder %s52, %s53
      %p67 = scmp.eq.s32.totalorder %s19, 3
      %p68 = por %p66, %p67
      %p70 = scmp.ne.s32.totalorder %s53, %s69
      %p71 = scmp.eq.s32.totalorder %s19, 0
      %p72 = por %p70, %p71
      %p73 = scmp.le.s32.totalorder 1, %s13
      %p74 = scmp.lt.s32.totalorder %s13, 5
      %p75 = pnand %p73, %p74
      %p76 = pneg %p75
      // Predicated region
      $region9: #{tpu_custom_call.1} parent=5 // pred_check
        _
      $region10: #{tpu_custom_call.1} parent=5 // pred_check_branch
        %78 = sbr.rel (%p75) target = $region12
      $region11: #{tpu_custom_call.1} parent=5 // pred_region
        %s79 = ssub.s32 %s13, 1
      $region12: #{tpu_custom_call.1} parent=5 // pred_fallthru
        _
      %p80 = scmp.lt.s32.totalorder %s13, 4
      // Predicated region
      $region13: #{tpu_custom_call.1} parent=5 // pred_check
        %p81 = pneg %p80
      $region14: #{tpu_custom_call.1} parent=5 // pred_check_branch
        %83 = sbr.rel (%p81) target = $region16
      $region15: #{tpu_custom_call.1} parent=5 // pred_region
        // Predicated region
        $region17: #{tpu_custom_call.1} parent=15 // pred_check
          %p84 = pneg %p33
        $region18: #{tpu_custom_call.1} parent=15 // pred_check_branch
          %86 = sbr.rel (%p84) target = $region20
        $region19: #{tpu_custom_call.1} parent=15 // pred_region
          %s87 = sand.u32 %s23, 1
          %s88 = scalar_lea.sflag [#allocation3], %s87
          %s89 = sand.u32 %s23, 1
          %s90 = smul.addr %s89, 128
          %s91 = scalar_lea.vmem [#allocation2], %s90
          %s93 = ssub.s32 2048, 2048
          %94 = vsyncadd %s88, %s93
          %s95 = smul.addr %s13, 16
          %s96 = smul.addr %s95, 128
          %s97 = scalar_lea.hbm %s0, %s96
          %s98 = sshll.u32 %s91, 4
          %s99 = int_to_ptr.vmem [resolvable:$true] %s98
          %104 = dma.hbm_to_vmem [thread:$0]  %s97, 2048, %s99, %s88, 128, 128, 8
        $region20: #{tpu_custom_call.1} parent=15 // pred_fallthru
          _
      $region16: #{tpu_custom_call.1} parent=5 // pred_fallthru
        _
      %p105 = scmp.le.s32.totalorder 1, %s13
      %p106 = scmp.lt.s32.totalorder %s13, 5
      %p107 = pnand %p105, %p106
      %p108 = pneg %p107
      // Predicated region
      $region21: #{tpu_custom_call.1} parent=5 // pred_check
        _
      $region22: #{tpu_custom_call.1} parent=5 // pred_check_branch
        %110 = sbr.rel (%p107) target = $region24
      $region23: #{tpu_custom_call.1} parent=5 // pred_region
        %s111 = ssub.s32 %s13, 1
        %s112 = sand.u32 %s26, 1
        %s113 = scalar_lea.sflag [#allocation3], %s112
        %s114 = sand.u32 %s26, 1
        %s115 = smul.addr %s114, 128
        %s116 = scalar_lea.vmem [#allocation2], %s115
        // Predicated region
        $region25: #{tpu_custom_call.1} parent=23 // pred_check
          %p117 = pneg %p39
        $region26: #{tpu_custom_call.1} parent=23 // pred_check_branch
          %119 = sbr.rel (%p117) target = $region28
        $region27: #{tpu_custom_call.1} parent=23 // pred_region
          %120 = dma.done %s113, 2048
        $region28: #{tpu_custom_call.1} parent=23 // pred_fallthru
          _
        %s121 = sand.u32 %s26, 1
        %s122 = scalar_lea.sflag [#allocation3], %s121
        %s123 = sand.u32 %s26, 1
        %s124 = smul.addr %s123, 128
        %s125 = scalar_lea.vmem [#allocation2], %s124
        %p126 = pneg %p39
        %p127 = pneg %p36
        %p128 = pneg %p65
        %p129 = pneg %p62
        %s130 = sand.u32 %s52, 1
        %s131 = scalar_lea.sflag [#allocation4], %s130
        %s132 = sand.u32 %s52, 1
        %s133 = smul.addr %s132, 128
        %s134 = scalar_lea.vmem [#allocation5], %s133
        %v136 = vld [vmem:[%s116] sm:$0xff]
        %v137 = vld [vmem:[%s116 + $0x8] sm:$0xff]
        %v138 = vld [vmem:[%s116 + $0x10] sm:$0xff]
        %v139 = vld [vmem:[%s116 + $0x18] sm:$0xff]
        %v140 = vld [vmem:[%s116 + $0x20] sm:$0xff]
        %v141 = vld [vmem:[%s116 + $0x28] sm:$0xff]
        %v142 = vld [vmem:[%s116 + $0x30] sm:$0xff]
        %v143 = vld [vmem:[%s116 + $0x38] sm:$0xff]
        %v144 = vld [vmem:[%s116 + $0x40] sm:$0xff]
        %v145 = vld [vmem:[%s116 + $0x48] sm:$0xff]
        %v146 = vld [vmem:[%s116 + $0x50] sm:$0xff]
        %v147 = vld [vmem:[%s116 + $0x58] sm:$0xff]
        %v148 = vld [vmem:[%s116 + $0x60] sm:$0xff]
        %v149 = vld [vmem:[%s116 + $0x68] sm:$0xff]
        %v150 = vld [vmem:[%s116 + $0x70] sm:$0xff]
        %v151 = vld [vmem:[%s116 + $0x78] sm:$0xff]
        %v152 = vmul.f32 %v136, %v136
        %v153 = vmul.f32 %v137, %v137
        %v154 = vmul.f32 %v138, %v138
        %v155 = vmul.f32 %v139, %v139
        %v156 = vmul.f32 %v140, %v140
        %v157 = vmul.f32 %v141, %v141
        %v158 = vmul.f32 %v142, %v142
        %v159 = vmul.f32 %v143, %v143
        %v160 = vmul.f32 %v144, %v144
        %v161 = vmul.f32 %v145, %v145
        %v162 = vmul.f32 %v146, %v146
        %v163 = vmul.f32 %v147, %v147
        %v164 = vmul.f32 %v148, %v148
        %v165 = vmul.f32 %v149, %v149
        %v166 = vmul.f32 %v150, %v150
        %v167 = vmul.f32 %v151, %v151
        %168 = vadd.xlane.f32.xlu0 %v152
        %v169 = vpop.xlane.xlu0 %168
        %170 = vadd.xlane.f32.xlu0 %v153
        %v171 = vpop.xlane.xlu0 %170
        %172 = vadd.xlane.f32.xlu0 %v154
        %v173 = vpop.xlane.xlu0 %172
        %174 = vadd.xlane.f32.xlu0 %v155
        %v175 = vpop.xlane.xlu0 %174
        %176 = vadd.xlane.f32.xlu0 %v156
        %v177 = vpop.xlane.xlu0 %176
        %178 = vadd.xlane.f32.xlu0 %v157
        %v179 = vpop.xlane.xlu0 %178
        %180 = vadd.xlane.f32.xlu0 %v158
        %v181 = vpop.xlane.xlu0 %180
        %182 = vadd.xlane.f32.xlu0 %v159
        %v183 = vpop.xlane.xlu0 %182
        %184 = vadd.xlane.f32.xlu0 %v160
        %v185 = vpop.xlane.xlu0 %184
        %186 = vadd.xlane.f32.xlu0 %v161
        %v187 = vpop.xlane.xlu0 %186
        %188 = vadd.xlane.f32.xlu0 %v162
        %v189 = vpop.xlane.xlu0 %188
        %190 = vadd.xlane.f32.xlu0 %v163
        %v191 = vpop.xlane.xlu0 %190
        %192 = vadd.xlane.f32.xlu0 %v164
        %v193 = vpop.xlane.xlu0 %192
        %194 = vadd.xlane.f32.xlu0 %v165
        %v195 = vpop.xlane.xlu0 %194
        %196 = vadd.xlane.f32.xlu0 %v166
        %v197 = vpop.xlane.xlu0 %196
        %198 = vadd.xlane.f32.xlu0 %v167
        %v199 = vpop.xlane.xlu0 %198
        %v200 = vmax.f32 %v169, 1e-24
        %v201 = vmax.f32 %v171, 1e-24
        %v202 = vmax.f32 %v173, 1e-24
        %v203 = vmax.f32 %v175, 1e-24
        %v204 = vmax.f32 %v177, 1e-24
        %v205 = vmax.f32 %v179, 1e-24
        %v206 = vmax.f32 %v181, 1e-24
        %v207 = vmax.f32 %v183, 1e-24
        %v208 = vmax.f32 %v185, 1e-24
        %v209 = vmax.f32 %v187, 1e-24
        %v210 = vmax.f32 %v189, 1e-24
        %v211 = vmax.f32 %v191, 1e-24
        %v212 = vmax.f32 %v193, 1e-24
        %v213 = vmax.f32 %v195, 1e-24
        %v214 = vmax.f32 %v197, 1e-24
        %v215 = vmax.f32 %v199, 1e-24
        %v216 = vrsqrt.pop %v200
        %v217 = vrsqrt.pop %v201
        %v218 = vrsqrt.pop %v202
        %v219 = vrsqrt.pop %v203
        %v220 = vrsqrt.pop %v204
        %v221 = vrsqrt.pop %v205
        %v222 = vrsqrt.pop %v206
        %v223 = vrsqrt.pop %v207
        %v224 = vrsqrt.pop %v208
        %v225 = vrsqrt.pop %v209
        %v226 = vrsqrt.pop %v210
        %v227 = vrsqrt.pop %v211
        %v228 = vrsqrt.pop %v212
        %v229 = vrsqrt.pop %v213
        %v230 = vrsqrt.pop %v214
        %v231 = vrsqrt.pop %v215
        %v232 = vmul.f32 %v136, %v216
        %v233 = vmul.f32 %v137, %v217
        %v234 = vmul.f32 %v138, %v218
        %v235 = vmul.f32 %v139, %v219
        %v236 = vmul.f32 %v140, %v220
        %v237 = vmul.f32 %v141, %v221
        %v238 = vmul.f32 %v142, %v222
        %v239 = vmul.f32 %v143, %v223
        %v240 = vmul.f32 %v144, %v224
        %v241 = vmul.f32 %v145, %v225
        %v242 = vmul.f32 %v146, %v226
        %v243 = vmul.f32 %v147, %v227
        %v244 = vmul.f32 %v148, %v228
        %v245 = vmul.f32 %v149, %v229
        %v246 = vmul.f32 %v150, %v230
        %v247 = vmul.f32 %v151, %v231
        %v248 = vpack.c.bf16 %v233, %v232
        %v249 = vpack.c.bf16 %v235, %v234
        %v250 = vpack.c.bf16 %v237, %v236
        %v251 = vpack.c.bf16 %v239, %v238
        %v252 = vpack.c.bf16 %v241, %v240
        %v253 = vpack.c.bf16 %v243, %v242
        %v254 = vpack.c.bf16 %v245, %v244
        %v255 = vpack.c.bf16 %v247, %v246
        %256 = vmatprep.subr.bf16.mxu0 0
        %257 = vmatpush1.bf16.xpose.msra.mxu0 %v255
        %258 = vmatprep.subr.bf16.mxu0 0
        %259 = vmatpush1.bf16.xpose.msra.mxu0 %v254
        %260 = vmatprep.subr.bf16.mxu0 0
        %261 = vmatpush1.bf16.xpose.msra.mxu0 %v253
        %262 = vmatprep.subr.bf16.mxu0 0
        %263 = vmatpush1.bf16.xpose.msra.mxu0 %v252
        %264 = vmatprep.subr.bf16.mxu0 0
        %265 = vmatpush1.bf16.xpose.msra.mxu0 %v251
        %266 = vmatprep.subr.bf16.mxu0 0
        %267 = vmatpush1.bf16.xpose.msra.mxu0 %v250
        %268 = vmatprep.subr.bf16.mxu0 0
        %269 = vmatpush1.bf16.xpose.msra.mxu0 %v249
        %270 = vmatprep.subr.bf16.mxu0 0
        %271 = vmatpush1.bf16.xpose.msra.mxu0 %v248
        %272 = vmatprep.subr.bf16.mxu0 0
        %273 = vmatpush2.bf16.xpose.msra.mxu0 0
        %274 = vmatprep.subr.bf16.mxu0 0
        %275 = vmatpush2.bf16.xpose.msra.mxu0 0
        %276 = vmatprep.subr.bf16.mxu0 0
        %277 = vmatpush2.bf16.xpose.msra.mxu0 0
        %278 = vmatprep.subr.bf16.mxu0 0
        %279 = vmatpush2.bf16.xpose.msra.mxu0 0
        %280 = vmatprep.subr.bf16.mxu0 0
        %281 = vmatpush2.bf16.xpose.msra.mxu0 0
        %282 = vmatprep.subr.bf16.mxu0 0
        %283 = vmatpush2.bf16.xpose.msra.mxu0 0
        %284 = vmatprep.subr.bf16.mxu0 0
        %285 = vmatpush2.bf16.xpose.msra.mxu0 0
        %286 = vmatprep.subr.bf16.mxu0 0
        %287 = vmatpush2.bf16.xpose.msra.mxu0 0
        %288 = vmatprep.mubr.bf16.mxu0 0
        %289 = vmatmul.mubr.bf16.gmra.mxu0 %v248
        %v290 = vpop.f32.mrf.mxu0
        %v291 = vadd.f32 0.0, %v290
        %v292 = vpop.f32.mrf.mxu0
        %v293 = vpop.f32.mrf.mxu0
        %v294 = vadd.f32 0.0, %v293
        %v295 = vpop.f32.mrf.mxu0
        %296 = vmatprep.mubr.bf16.mxu0 0
        %297 = vmatmul.mubr.bf16.gmra.mxu0 %v249
        %v298 = vpop.f32.mrf.mxu0
        %v299 = vadd.f32 0.0, %v298
        %v300 = vpop.f32.mrf.mxu0
        %v301 = vpop.f32.mrf.mxu0
        %v302 = vadd.f32 0.0, %v301
        %v303 = vpop.f32.mrf.mxu0
        %304 = vmatprep.mubr.bf16.mxu0 0
        %305 = vmatmul.mubr.bf16.gmra.mxu0 %v250
        %v306 = vpop.f32.mrf.mxu0
        %v307 = vadd.f32 0.0, %v306
        %v308 = vpop.f32.mrf.mxu0
        %v309 = vpop.f32.mrf.mxu0
        %v310 = vadd.f32 0.0, %v309
        %v311 = vpop.f32.mrf.mxu0
        %312 = vmatprep.mubr.bf16.mxu0 0
        %313 = vmatmul.mubr.bf16.gmra.mxu0 %v251
        %v314 = vpop.f32.mrf.mxu0
        %v315 = vadd.f32 0.0, %v314
        %v316 = vpop.f32.mrf.mxu0
        %v317 = vpop.f32.mrf.mxu0
        %v318 = vadd.f32 0.0, %v317
        %v319 = vpop.f32.mrf.mxu0
        %320 = vmatprep.mubr.bf16.mxu0 0
        %321 = vmatmul.mubr.bf16.gmra.mxu0 %v252
        %v322 = vpop.f32.mrf.mxu0
        %v323 = vadd.f32 0.0, %v322
        %v324 = vpop.f32.mrf.mxu0
        %v325 = vpop.f32.mrf.mxu0
        %v326 = vadd.f32 0.0, %v325
        %v327 = vpop.f32.mrf.mxu0
        %328 = vmatprep.mubr.bf16.mxu0 0
        %329 = vmatmul.mubr.bf16.gmra.mxu0 %v253
        %v330 = vpop.f32.mrf.mxu0
        %v331 = vadd.f32 0.0, %v330
        %v332 = vpop.f32.mrf.mxu0
        %v333 = vpop.f32.mrf.mxu0
        %v334 = vadd.f32 0.0, %v333
        %v335 = vpop.f32.mrf.mxu0
        %336 = vmatprep.mubr.bf16.mxu0 0
        %337 = vmatmul.mubr.bf16.gmra.mxu0 %v254
        %v338 = vpop.f32.mrf.mxu0
        %v339 = vadd.f32 0.0, %v338
        %v340 = vpop.f32.mrf.mxu0
        %v341 = vpop.f32.mrf.mxu0
        %v342 = vadd.f32 0.0, %v341
        %v343 = vpop.f32.mrf.mxu0
        %344 = vmatprep.mubr.bf16.mxu0 0
        %345 = vmatmul.mubr.bf16.gmra.mxu0 %v255
        %v346 = vpop.f32.mrf.mxu0
        %v347 = vadd.f32 0.0, %v346
        %v348 = vpop.f32.mrf.mxu0
        %v349 = vpop.f32.mrf.mxu0
        %v350 = vadd.f32 0.0, %v349
        %v351 = vpop.f32.mrf.mxu0
        %352 = vdwg.mxu0
        %353 = vmax.xlane.f32.xlu0 %v291
        %v354 = vpop.xlane.xlu0 %353
        %355 = vmax.xlane.f32.xlu0 %v294
        %v356 = vpop.xlane.xlu0 %355
        %357 = vmax.xlane.f32.xlu0 %v299
        %v358 = vpop.xlane.xlu0 %357
        %359 = vmax.xlane.f32.xlu0 %v302
        %v360 = vpop.xlane.xlu0 %359
        %361 = vmax.xlane.f32.xlu0 %v307
        %v362 = vpop.xlane.xlu0 %361
        %363 = vmax.xlane.f32.xlu0 %v310
        %v364 = vpop.xlane.xlu0 %363
        %365 = vmax.xlane.f32.xlu0 %v315
        %v366 = vpop.xlane.xlu0 %365
        %367 = vmax.xlane.f32.xlu0 %v318
        %v368 = vpop.xlane.xlu0 %367
        %369 = vmax.xlane.f32.xlu0 %v323
        %v370 = vpop.xlane.xlu0 %369
        %371 = vmax.xlane.f32.xlu0 %v326
        %v372 = vpop.xlane.xlu0 %371
        %373 = vmax.xlane.f32.xlu0 %v331
        %v374 = vpop.xlane.xlu0 %373
        %375 = vmax.xlane.f32.xlu0 %v334
        %v376 = vpop.xlane.xlu0 %375
        %377 = vmax.xlane.f32.xlu0 %v339
        %v378 = vpop.xlane.xlu0 %377
        %379 = vmax.xlane.f32.xlu0 %v342
        %v380 = vpop.xlane.xlu0 %379
        %381 = vmax.xlane.f32.xlu0 %v347
        %v382 = vpop.xlane.xlu0 %381
        %383 = vmax.xlane.f32.xlu0 %v350
        %v384 = vpop.xlane.xlu0 %383
        %vm385 = vcmp.ge.f32.partialorder %v291, %v354
        %vm386 = vcmp.ge.f32.partialorder %v294, %v356
        %vm387 = vcmp.ge.f32.partialorder %v299, %v358
        %vm388 = vcmp.ge.f32.partialorder %v302, %v360
        %vm389 = vcmp.ge.f32.partialorder %v307, %v362
        %vm390 = vcmp.ge.f32.partialorder %v310, %v364
        %vm391 = vcmp.ge.f32.partialorder %v315, %v366
        %vm392 = vcmp.ge.f32.partialorder %v318, %v368
        %vm393 = vcmp.ge.f32.partialorder %v323, %v370
        %vm394 = vcmp.ge.f32.partialorder %v326, %v372
        %vm395 = vcmp.ge.f32.partialorder %v331, %v374
        %vm396 = vcmp.ge.f32.partialorder %v334, %v376
        %vm397 = vcmp.ge.f32.partialorder %v339, %v378
        %vm398 = vcmp.ge.f32.partialorder %v342, %v380
        %vm399 = vcmp.ge.f32.partialorder %v347, %v382
        %vm400 = vcmp.ge.f32.partialorder %v350, %v384
        %v401 = vsel %vm385, -inf, %v291
        %v402 = vsel %vm386, -inf, %v294
        %v403 = vsel %vm387, -inf, %v299
        %v404 = vsel %vm388, -inf, %v302
        %v405 = vsel %vm389, -inf, %v307
        %v406 = vsel %vm390, -inf, %v310
        %v407 = vsel %vm391, -inf, %v315
        %v408 = vsel %vm392, -inf, %v318
        %v409 = vsel %vm393, -inf, %v323
        %v410 = vsel %vm394, -inf, %v326
        %v411 = vsel %vm395, -inf, %v331
        %v412 = vsel %vm396, -inf, %v334
        %v413 = vsel %vm397, -inf, %v339
        %v414 = vsel %vm398, -inf, %v342
        %v415 = vsel %vm399, -inf, %v347
        %v416 = vsel %vm400, -inf, %v350
        %417 = vmax.xlane.f32.xlu0 %v401
        %v418 = vpop.xlane.xlu0 %417
        %419 = vmax.xlane.f32.xlu0 %v402
        %v420 = vpop.xlane.xlu0 %419
        %421 = vmax.xlane.f32.xlu0 %v403
        %v422 = vpop.xlane.xlu0 %421
        %423 = vmax.xlane.f32.xlu0 %v404
        %v424 = vpop.xlane.xlu0 %423
        %425 = vmax.xlane.f32.xlu0 %v405
        %v426 = vpop.xlane.xlu0 %425
        %427 = vmax.xlane.f32.xlu0 %v406
        %v428 = vpop.xlane.xlu0 %427
        %429 = vmax.xlane.f32.xlu0 %v407
        %v430 = vpop.xlane.xlu0 %429
        %431 = vmax.xlane.f32.xlu0 %v408
        %v432 = vpop.xlane.xlu0 %431
        %433 = vmax.xlane.f32.xlu0 %v409
        %v434 = vpop.xlane.xlu0 %433
        %435 = vmax.xlane.f32.xlu0 %v410
        %v436 = vpop.xlane.xlu0 %435
        %437 = vmax.xlane.f32.xlu0 %v411
        %v438 = vpop.xlane.xlu0 %437
        %439 = vmax.xlane.f32.xlu0 %v412
        %v440 = vpop.xlane.xlu0 %439
        %441 = vmax.xlane.f32.xlu0 %v413
        %v442 = vpop.xlane.xlu0 %441
        %443 = vmax.xlane.f32.xlu0 %v414
        %v444 = vpop.xlane.xlu0 %443
        %445 = vmax.xlane.f32.xlu0 %v415
        %v446 = vpop.xlane.xlu0 %445
        %447 = vmax.xlane.f32.xlu0 %v416
        %v448 = vpop.xlane.xlu0 %447
        %vm449 = vcmp.ge.f32.partialorder %v401, %v418
        %vm450 = vcmp.ge.f32.partialorder %v402, %v420
        %vm451 = vcmp.ge.f32.partialorder %v403, %v422
        %vm452 = vcmp.ge.f32.partialorder %v404, %v424
        %vm453 = vcmp.ge.f32.partialorder %v405, %v426
        %vm454 = vcmp.ge.f32.partialorder %v406, %v428
        %vm455 = vcmp.ge.f32.partialorder %v407, %v430
        %vm456 = vcmp.ge.f32.partialorder %v408, %v432
        %vm457 = vcmp.ge.f32.partialorder %v409, %v434
        %vm458 = vcmp.ge.f32.partialorder %v410, %v436
        %vm459 = vcmp.ge.f32.partialorder %v411, %v438
        %vm460 = vcmp.ge.f32.partialorder %v412, %v440
        %vm461 = vcmp.ge.f32.partialorder %v413, %v442
        %vm462 = vcmp.ge.f32.partialorder %v414, %v444
        %vm463 = vcmp.ge.f32.partialorder %v415, %v446
        %vm464 = vcmp.ge.f32.partialorder %v416, %v448
        %v465 = vsel %vm449, -inf, %v401
        %v466 = vsel %vm450, -inf, %v402
        %v467 = vsel %vm451, -inf, %v403
        %v468 = vsel %vm452, -inf, %v404
        %v469 = vsel %vm453, -inf, %v405
        %v470 = vsel %vm454, -inf, %v406
        %v471 = vsel %vm455, -inf, %v407
        %v472 = vsel %vm456, -inf, %v408
        %v473 = vsel %vm457, -inf, %v409
        %v474 = vsel %vm458, -inf, %v410
        %v475 = vsel %vm459, -inf, %v411
        %v476 = vsel %vm460, -inf, %v412
        %v477 = vsel %vm461, -inf, %v413
        %v478 = vsel %vm462, -inf, %v414
        %v479 = vsel %vm463, -inf, %v415
        %v480 = vsel %vm464, -inf, %v416
        %481 = vmax.xlane.f32.xlu0 %v465
        %v482 = vpop.xlane.xlu0 %481
        %483 = vmax.xlane.f32.xlu0 %v466
        %v484 = vpop.xlane.xlu0 %483
        %485 = vmax.xlane.f32.xlu0 %v467
        %v486 = vpop.xlane.xlu0 %485
        %487 = vmax.xlane.f32.xlu0 %v468
        %v488 = vpop.xlane.xlu0 %487
        %489 = vmax.xlane.f32.xlu0 %v469
        %v490 = vpop.xlane.xlu0 %489
        %491 = vmax.xlane.f32.xlu0 %v470
        %v492 = vpop.xlane.xlu0 %491
        %493 = vmax.xlane.f32.xlu0 %v471
        %v494 = vpop.xlane.xlu0 %493
        %495 = vmax.xlane.f32.xlu0 %v472
        %v496 = vpop.xlane.xlu0 %495
        %497 = vmax.xlane.f32.xlu0 %v473
        %v498 = vpop.xlane.xlu0 %497
        %499 = vmax.xlane.f32.xlu0 %v474
        %v500 = vpop.xlane.xlu0 %499
        %501 = vmax.xlane.f32.xlu0 %v475
        %v502 = vpop.xlane.xlu0 %501
        %503 = vmax.xlane.f32.xlu0 %v476
        %v504 = vpop.xlane.xlu0 %503
        %505 = vmax.xlane.f32.xlu0 %v477
        %v506 = vpop.xlane.xlu0 %505
        %507 = vmax.xlane.f32.xlu0 %v478
        %v508 = vpop.xlane.xlu0 %507
        %509 = vmax.xlane.f32.xlu0 %v479
        %v510 = vpop.xlane.xlu0 %509
        %511 = vmax.xlane.f32.xlu0 %v480
        %v512 = vpop.xlane.xlu0 %511
        %vm513 = vcmp.ge.f32.partialorder %v465, %v482
        %vm514 = vcmp.ge.f32.partialorder %v466, %v484
        %vm515 = vcmp.ge.f32.partialorder %v467, %v486
        %vm516 = vcmp.ge.f32.partialorder %v468, %v488
        %vm517 = vcmp.ge.f32.partialorder %v469, %v490
        %vm518 = vcmp.ge.f32.partialorder %v470, %v492
        %vm519 = vcmp.ge.f32.partialorder %v471, %v494
        %vm520 = vcmp.ge.f32.partialorder %v472, %v496
        %vm521 = vcmp.ge.f32.partialorder %v473, %v498
        %vm522 = vcmp.ge.f32.partialorder %v474, %v500
        %vm523 = vcmp.ge.f32.partialorder %v475, %v502
        %vm524 = vcmp.ge.f32.partialorder %v476, %v504
        %vm525 = vcmp.ge.f32.partialorder %v477, %v506
        %vm526 = vcmp.ge.f32.partialorder %v478, %v508
        %vm527 = vcmp.ge.f32.partialorder %v479, %v510
        %vm528 = vcmp.ge.f32.partialorder %v480, %v512
        %v529 = vsel %vm513, -inf, %v465
        %v530 = vsel %vm514, -inf, %v466
        %v531 = vsel %vm515, -inf, %v467
        %v532 = vsel %vm516, -inf, %v468
        %v533 = vsel %vm517, -inf, %v469
        %v534 = vsel %vm518, -inf, %v470
        %v535 = vsel %vm519, -inf, %v471
        %v536 = vsel %vm520, -inf, %v472
        %v537 = vsel %vm521, -inf, %v473
        %v538 = vsel %vm522, -inf, %v474
        %v539 = vsel %vm523, -inf, %v475
        %v540 = vsel %vm524, -inf, %v476
        %v541 = vsel %vm525, -inf, %v477
        %v542 = vsel %vm526, -inf, %v478
        %v543 = vsel %vm527, -inf, %v479
        %v544 = vsel %vm528, -inf, %v480
        %545 = vmax.xlane.f32.xlu0 %v529
        %v546 = vpop.xlane.xlu0 %545
        %547 = vmax.xlane.f32.xlu0 %v530
        %v548 = vpop.xlane.xlu0 %547
        %549 = vmax.xlane.f32.xlu0 %v531
        %v550 = vpop.xlane.xlu0 %549
        %551 = vmax.xlane.f32.xlu0 %v532
        %v552 = vpop.xlane.xlu0 %551
        %553 = vmax.xlane.f32.xlu0 %v533
        %v554 = vpop.xlane.xlu0 %553
        %555 = vmax.xlane.f32.xlu0 %v534
        %v556 = vpop.xlane.xlu0 %555
        %557 = vmax.xlane.f32.xlu0 %v535
        %v558 = vpop.xlane.xlu0 %557
        %559 = vmax.xlane.f32.xlu0 %v536
        %v560 = vpop.xlane.xlu0 %559
        %561 = vmax.xlane.f32.xlu0 %v537
        %v562 = vpop.xlane.xlu0 %561
        %563 = vmax.xlane.f32.xlu0 %v538
        %v564 = vpop.xlane.xlu0 %563
        %565 = vmax.xlane.f32.xlu0 %v539
        %v566 = vpop.xlane.xlu0 %565
        %567 = vmax.xlane.f32.xlu0 %v540
        %v568 = vpop.xlane.xlu0 %567
        %569 = vmax.xlane.f32.xlu0 %v541
        %v570 = vpop.xlane.xlu0 %569
        %571 = vmax.xlane.f32.xlu0 %v542
        %v572 = vpop.xlane.xlu0 %571
        %573 = vmax.xlane.f32.xlu0 %v543
        %v574 = vpop.xlane.xlu0 %573
        %575 = vmax.xlane.f32.xlu0 %v544
        %v576 = vpop.xlane.xlu0 %575
        %vm577 = vcmp.ge.f32.partialorder %v291, %v546
        %vm578 = vcmp.ge.f32.partialorder %v294, %v548
        %vm579 = vcmp.ge.f32.partialorder %v299, %v550
        %vm580 = vcmp.ge.f32.partialorder %v302, %v552
        %vm581 = vcmp.ge.f32.partialorder %v307, %v554
        %vm582 = vcmp.ge.f32.partialorder %v310, %v556
        %vm583 = vcmp.ge.f32.partialorder %v315, %v558
        %vm584 = vcmp.ge.f32.partialorder %v318, %v560
        %vm585 = vcmp.ge.f32.partialorder %v323, %v562
        %vm586 = vcmp.ge.f32.partialorder %v326, %v564
        %vm587 = vcmp.ge.f32.partialorder %v331, %v566
        %vm588 = vcmp.ge.f32.partialorder %v334, %v568
        %vm589 = vcmp.ge.f32.partialorder %v339, %v570
        %vm590 = vcmp.ge.f32.partialorder %v342, %v572
        %vm591 = vcmp.ge.f32.partialorder %v347, %v574
        %vm592 = vcmp.ge.f32.partialorder %v350, %v576
        %v593 = vsel %vm577, %v291, 0.0
        %v594 = vsel %vm578, %v294, 0.0
        %v595 = vsel %vm579, %v299, 0.0
        %v596 = vsel %vm580, %v302, 0.0
        %v597 = vsel %vm581, %v307, 0.0
        %v598 = vsel %vm582, %v310, 0.0
        %v599 = vsel %vm583, %v315, 0.0
        %v600 = vsel %vm584, %v318, 0.0
        %v601 = vsel %vm585, %v323, 0.0
        %v602 = vsel %vm586, %v326, 0.0
        %v603 = vsel %vm587, %v331, 0.0
        %v604 = vsel %vm588, %v334, 0.0
        %v605 = vsel %vm589, %v339, 0.0
        %v606 = vsel %vm590, %v342, 0.0
        %v607 = vsel %vm591, %v347, 0.0
        %v608 = vsel %vm592, %v350, 0.0
        %609 = vadd.xlane.f32.xlu0 %v593
        %v610 = vpop.xlane.xlu0 %609
        %611 = vadd.xlane.f32.xlu0 %v594
        %v612 = vpop.xlane.xlu0 %611
        %613 = vadd.xlane.f32.xlu0 %v595
        %v614 = vpop.xlane.xlu0 %613
        %615 = vadd.xlane.f32.xlu0 %v596
        %v616 = vpop.xlane.xlu0 %615
        %617 = vadd.xlane.f32.xlu0 %v597
        %v618 = vpop.xlane.xlu0 %617
        %619 = vadd.xlane.f32.xlu0 %v598
        %v620 = vpop.xlane.xlu0 %619
        %621 = vadd.xlane.f32.xlu0 %v599
        %v622 = vpop.xlane.xlu0 %621
        %623 = vadd.xlane.f32.xlu0 %v600
        %v624 = vpop.xlane.xlu0 %623
        %625 = vadd.xlane.f32.xlu0 %v601
        %v626 = vpop.xlane.xlu0 %625
        %627 = vadd.xlane.f32.xlu0 %v602
        %v628 = vpop.xlane.xlu0 %627
        %629 = vadd.xlane.f32.xlu0 %v603
        %v630 = vpop.xlane.xlu0 %629
        %631 = vadd.xlane.f32.xlu0 %v604
        %v632 = vpop.xlane.xlu0 %631
        %633 = vadd.xlane.f32.xlu0 %v605
        %v634 = vpop.xlane.xlu0 %633
        %635 = vadd.xlane.f32.xlu0 %v606
        %v636 = vpop.xlane.xlu0 %635
        %637 = vadd.xlane.f32.xlu0 %v607
        %v638 = vpop.xlane.xlu0 %637
        %639 = vadd.xlane.f32.xlu0 %v608
        %v640 = vpop.xlane.xlu0 %639
        %641 = vmatprep.subr.mxu0 0.0
        %642 = vmatpush1.xpose.msra.mxu0 %v608
        %643 = vmatprep.subr.mxu0 0.0
        %644 = vmatpush1.xpose.msra.mxu0 %v607
        %645 = vmatprep.subr.mxu0 0.0
        %646 = vmatpush1.xpose.msra.mxu0 %v606
        %647 = vmatprep.subr.mxu0 0.0
        %648 = vmatpush1.xpose.msra.mxu0 %v605
        %649 = vmatprep.subr.mxu0 0.0
        %650 = vmatpush1.xpose.msra.mxu0 %v604
        %651 = vmatprep.subr.mxu0 0.0
        %652 = vmatpush1.xpose.msra.mxu0 %v603
        %653 = vmatprep.subr.mxu0 0.0
        %654 = vmatpush1.xpose.msra.mxu0 %v602
        %655 = vmatprep.subr.mxu0 0.0
        %656 = vmatpush1.xpose.msra.mxu0 %v601
        %657 = vmatprep.subr.mxu0 0.0
        %658 = vmatpush1.xpose.msra.mxu0 %v600
        %659 = vmatprep.subr.mxu0 0.0
        %660 = vmatpush1.xpose.msra.mxu0 %v599
        %661 = vmatprep.subr.mxu0 0.0
        %662 = vmatpush1.xpose.msra.mxu0 %v598
        %663 = vmatprep.subr.mxu0 0.0
        %664 = vmatpush1.xpose.msra.mxu0 %v597
        %665 = vmatprep.subr.mxu0 0.0
        %666 = vmatpush1.xpose.msra.mxu0 %v596
        %667 = vmatprep.subr.mxu0 0.0
        %668 = vmatpush1.xpose.msra.mxu0 %v595
        %669 = vmatprep.subr.mxu0 0.0
        %670 = vmatpush1.xpose.msra.mxu0 %v594
        %671 = vmatprep.subr.mxu0 0.0
        %672 = vmatpush1.xpose.msra.mxu0 %v593
        %673 = vmatprep.subr.mxu0 0.0
        %674 = vmatpush2.xpose.msra.mxu0 0.0
        %675 = vmatprep.subr.mxu0 0.0
        %676 = vmatpush2.xpose.msra.mxu0 0.0
        %677 = vmatprep.subr.mxu0 0.0
        %678 = vmatpush2.xpose.msra.mxu0 0.0
        %679 = vmatprep.subr.mxu0 0.0
        %680 = vmatpush2.xpose.msra.mxu0 0.0
        %681 = vmatprep.subr.mxu0 0.0
        %682 = vmatpush2.xpose.msra.mxu0 0.0
        %683 = vmatprep.subr.mxu0 0.0
        %684 = vmatpush2.xpose.msra.mxu0 0.0
        %685 = vmatprep.subr.mxu0 0.0
        %686 = vmatpush2.xpose.msra.mxu0 0.0
        %687 = vmatprep.subr.mxu0 0.0
        %688 = vmatpush2.xpose.msra.mxu0 0.0
        %689 = vmatprep.subr.mxu0 0.0
        %690 = vmatpush2.xpose.msra.mxu0 0.0
        %691 = vmatprep.subr.mxu0 0.0
        %692 = vmatpush2.xpose.msra.mxu0 0.0
        %693 = vmatprep.subr.mxu0 0.0
        %694 = vmatpush2.xpose.msra.mxu0 0.0
        %695 = vmatprep.subr.mxu0 0.0
        %696 = vmatpush2.xpose.msra.mxu0 0.0
        %697 = vmatprep.subr.mxu0 0.0
        %698 = vmatpush2.xpose.msra.mxu0 0.0
        %699 = vmatprep.subr.mxu0 0.0
        %700 = vmatpush2.xpose.msra.mxu0 0.0
        %701 = vmatprep.subr.mxu0 0.0
        %702 = vmatpush2.xpose.msra.mxu0 0.0
        %703 = vmatprep.subr.mxu0 0.0
        %704 = vmatpush2.xpose.msra.mxu0 0.0
        %705 = vmatprep.mubr.f32.mxu0 0.0
        %706 = vmatmul.mubr.f32.gmra.mxu0 1.0
        %v707 = vpop.f32.mrf.mxu0
        %v708 = vadd.f32 0.0, %v707
        %v709 = vpop.f32.mrf.mxu0
        %710 = vdwg.mxu0
        %vm711 = vcmp.gt.f32.partialorder %v610, 0.0
        %vm712 = vcmp.gt.f32.partialorder %v612, 0.0
        %vm713 = vcmp.gt.f32.partialorder %v614, 0.0
        %vm714 = vcmp.gt.f32.partialorder %v616, 0.0
        %vm715 = vcmp.gt.f32.partialorder %v618, 0.0
        %vm716 = vcmp.gt.f32.partialorder %v620, 0.0
        %vm717 = vcmp.gt.f32.partialorder %v622, 0.0
        %vm718 = vcmp.gt.f32.partialorder %v624, 0.0
        %vm719 = vcmp.gt.f32.partialorder %v626, 0.0
        %vm720 = vcmp.gt.f32.partialorder %v628, 0.0
        %vm721 = vcmp.gt.f32.partialorder %v630, 0.0
        %vm722 = vcmp.gt.f32.partialorder %v632, 0.0
        %vm723 = vcmp.gt.f32.partialorder %v634, 0.0
        %vm724 = vcmp.gt.f32.partialorder %v636, 0.0
        %vm725 = vcmp.gt.f32.partialorder %v638, 0.0
        %vm726 = vcmp.gt.f32.partialorder %v640, 0.0
        %v727 = vrsqrt.pop %v610
        %v728 = vrsqrt.pop %v612
        %v729 = vrsqrt.pop %v614
        %v730 = vrsqrt.pop %v616
        %v731 = vrsqrt.pop %v618
        %v732 = vrsqrt.pop %v620
        %v733 = vrsqrt.pop %v622
        %v734 = vrsqrt.pop %v624
        %v735 = vrsqrt.pop %v626
        %v736 = vrsqrt.pop %v628
        %v737 = vrsqrt.pop %v630
        %v738 = vrsqrt.pop %v632
        %v739 = vrsqrt.pop %v634
        %v740 = vrsqrt.pop %v636
        %v741 = vrsqrt.pop %v638
        %v742 = vrsqrt.pop %v640
        %v743 = vsel %vm711, %v727, 0.0
        %v744 = vsel %vm712, %v728, 0.0
        %v745 = vsel %vm713, %v729, 0.0
        %v746 = vsel %vm714, %v730, 0.0
        %v747 = vsel %vm715, %v731, 0.0
        %v748 = vsel %vm716, %v732, 0.0
        %v749 = vsel %vm717, %v733, 0.0
        %v750 = vsel %vm718, %v734, 0.0
        %v751 = vsel %vm719, %v735, 0.0
        %v752 = vsel %vm720, %v736, 0.0
        %v753 = vsel %vm721, %v737, 0.0
        %v754 = vsel %vm722, %v738, 0.0
        %v755 = vsel %vm723, %v739, 0.0
        %v756 = vsel %vm724, %v740, 0.0
        %v757 = vsel %vm725, %v741, 0.0
        %v758 = vsel %vm726, %v742, 0.0
        %vm759 = vcmp.gt.f32.partialorder %v708, 0.0
        %v760 = vrsqrt.pop %v708
        %v761 = vsel %vm759, %v760, 0.0
        %v762 = vmul.f32 %v593, %v743
        %v763 = vmul.f32 %v594, %v744
        %v764 = vmul.f32 %v595, %v745
        %v765 = vmul.f32 %v596, %v746
        %v766 = vmul.f32 %v597, %v747
        %v767 = vmul.f32 %v598, %v748
        %v768 = vmul.f32 %v599, %v749
        %v769 = vmul.f32 %v600, %v750
        %v770 = vmul.f32 %v601, %v751
        %v771 = vmul.f32 %v602, %v752
        %v772 = vmul.f32 %v603, %v753
        %v773 = vmul.f32 %v604, %v754
        %v774 = vmul.f32 %v605, %v755
        %v775 = vmul.f32 %v606, %v756
        %v776 = vmul.f32 %v607, %v757
        %v777 = vmul.f32 %v608, %v758
        %v778 = vlaneseq
        %v779 = vshrl.u32 %v778, 7
        %v780 = vsub.s32 0, %v779
        %v781 = vrot.slane %v761, %v780
        %v782 = vmul.f32 %v762, %v781
        %v783 = vmul.f32 %v763, %v781
        %v784 = vmul.f32 %v764, %v781
        %v785 = vmul.f32 %v765, %v781
        %v786 = vmul.f32 %v766, %v781
        %v787 = vmul.f32 %v767, %v781
        %v788 = vmul.f32 %v768, %v781
        %v789 = vmul.f32 %v769, %v781
        %v790 = vmul.f32 %v770, %v781
        %v791 = vmul.f32 %v771, %v781
        %v792 = vmul.f32 %v772, %v781
        %v793 = vmul.f32 %v773, %v781
        %v794 = vmul.f32 %v774, %v781
        %v795 = vmul.f32 %v775, %v781
        %v796 = vmul.f32 %v776, %v781
        %v797 = vmul.f32 %v777, %v781
        %798 = vst [vmem:[%s134] sm:$0xff] %v782
        %799 = vst [vmem:[%s134 + $0x8] sm:$0xff] %v783
        %800 = vst [vmem:[%s134 + $0x10] sm:$0xff] %v784
        %801 = vst [vmem:[%s134 + $0x18] sm:$0xff] %v785
        %802 = vst [vmem:[%s134 + $0x20] sm:$0xff] %v786
        %803 = vst [vmem:[%s134 + $0x28] sm:$0xff] %v787
        %804 = vst [vmem:[%s134 + $0x30] sm:$0xff] %v788
        %805 = vst [vmem:[%s134 + $0x38] sm:$0xff] %v789
        %806 = vst [vmem:[%s134 + $0x40] sm:$0xff] %v790
        %807 = vst [vmem:[%s134 + $0x48] sm:$0xff] %v791
        %808 = vst [vmem:[%s134 + $0x50] sm:$0xff] %v792
        %809 = vst [vmem:[%s134 + $0x58] sm:$0xff] %v793
        %810 = vst [vmem:[%s134 + $0x60] sm:$0xff] %v794
        %811 = vst [vmem:[%s134 + $0x68] sm:$0xff] %v795
        %812 = vst [vmem:[%s134 + $0x70] sm:$0xff] %v796
        %813 = vst [vmem:[%s134 + $0x78] sm:$0xff] %v797
        %s814 = sand.u32 %s52, 1
        %s815 = scalar_lea.sflag [#allocation4], %s814
        %s816 = sand.u32 %s52, 1
        %s817 = smul.addr %s816, 128
        %s818 = scalar_lea.vmem [#allocation5], %s817
        // Predicated region
        $region29: #{tpu_custom_call.1} parent=23 // pred_check
          %p819 = pneg %p62
        $region30: #{tpu_custom_call.1} parent=23 // pred_check_branch
          %821 = sbr.rel (%p819) target = $region32
        $region31: #{tpu_custom_call.1} parent=23 // pred_region
          %s823 = ssub.s32 2048, 2048
          %824 = vsyncadd %s815, %s823
          %s825 = smul.addr %s18, 16
          %s826 = smul.addr %s825, 128
          %s827 = scalar_lea.hbm %s1, %s826
          %s828 = sshll.u32 %s818, 4
          %s829 = int_to_ptr.vmem [resolvable:$true] %s828
          %834 = dma.vmem_to_hbm [thread:$0]  %s829, 2048, %s827, %s815, 128, 128, 8
        $region32: #{tpu_custom_call.1} parent=23 // pred_fallthru
          _
      $region24: #{tpu_custom_call.1} parent=5 // pred_fallthru
        _
      %p835 = scmp.le.s32.totalorder 2, %s13
      // Predicated region
      $region33: #{tpu_custom_call.1} parent=5 // pred_check
        %p836 = pneg %p835
      $region34: #{tpu_custom_call.1} parent=5 // pred_check_branch
        %838 = sbr.rel (%p836) target = $region36
      $region35: #{tpu_custom_call.1} parent=5 // pred_region
        %s839 = ssub.s32 %s13, 2
        // Predicated region
        $region37: #{tpu_custom_call.1} parent=35 // pred_check
          %p840 = pneg %p68
        $region38: #{tpu_custom_call.1} parent=35 // pred_check_branch
          %842 = sbr.rel (%p840) target = $region40
        $region39: #{tpu_custom_call.1} parent=35 // pred_region
          %s843 = sand.u32 %s53, 1
          %s844 = scalar_lea.sflag [#allocation4], %s843
          %s845 = sand.u32 %s53, 1
          %s846 = smul.addr %s845, 128
          %s847 = scalar_lea.vmem [#allocation5], %s846
          %848 = dma.done %s844, 2048
        $region40: #{tpu_custom_call.1} parent=35 // pred_fallthru
          _
      $region36: #{tpu_custom_call.1} parent=5 // pred_fallthru
        _
    $region6: #{tpu_custom_call.1} parent=1 // loop_footer
      %s17 = sadd.s32 1, %s13
    $region7: #{tpu_custom_call.1} parent=1 // loop_footer_branch
      %12 = sbr.rel target = $region3
    $region8: #{tpu_custom_call.1} parent=1 // loop_exit
      _
    %849 = vsyncpa [#allocation3], 1
    %s850 = scalar_lea.sflag [#allocation3], 1
    %851 = vsyncpa %s850, 1
    %852 = vsyncpa [#allocation4], 1
    %s853 = scalar_lea.sflag [#allocation4], 1
    %854 = vsyncpa %s853, 1

</llo_original>
